<compile_context>
chip_gen: v7x
topology: tpu7x:2x2x1
jax: 0.10.0
libtpu: 0.0.40
codegen_flags: <defaults>
</compile_context>

<pallas_src>
import functools

import jax
import jax.numpy as jnp
from jax.experimental import pallas as pl
from jax.experimental.pallas import tpu as pltpu


def _pinn_kernel(in_ref,           # (2, tm)   rows: [x; t], batch on lanes
                 w1t_ref, b1_ref,  # (H, 2), (H, 1)
                 w2t_ref, b2_ref,  # (H, H), (H, 1)
                 w3_ref, b3_ref,   # (H, 1), (1, 1)
                 o_ref):           # (1, tm)
    x_row = in_ref[0:1, :]                                   # (1, tm)
    t_row = in_ref[1:2, :]                                   # (1, tm)

    # Layer 1 (in_features=2): VPU broadcast FMA instead of a K=2 MXU matmul.
    h = w1t_ref[:, 0:1] * x_row + w1t_ref[:, 1:2] * t_row + b1_ref[...]   # (H, tm)
    h = jnp.maximum(h, 0.0)

    # Layer 2 (HxH): the only real MXU work; batch tile is the lane-dense N dim.
    h = jnp.dot(w2t_ref[...], h, preferred_element_type=jnp.float32) + b2_ref[...]
    h = jnp.maximum(h, 0.0)                                   # (H, tm)

    # Layer 3 (out_features=1): weighted sum over the H sublanes (XLU reduce);
    # avoids an M=1 MXU matmul and keeps the store lane-dense and unmasked.
    out = jnp.sum(w3_ref[...] * h, axis=0, keepdims=True) + b3_ref[...]   # (1, tm)
    o_ref[...] = out.astype(o_ref.dtype)


def _round_up(n, m):
    return ((n + m - 1) // m) * m


@functools.partial(jax.jit, static_argnames=("tm",))
def pinn_forward(x, t, params, *, tm=512):
    """Forward pass of the PINN MLP.

    x, t : (N, 1) float32
    params : dict with w1 (2,H), b1 (1,H), w2 (H,H), b2 (1,H), w3 (H,1), b3 (1,1)
    """
    N = x.shape[0]
    H = params["w1"].shape[1]

    # --- choose a lane-dense batch tile (multiple of 128) -------------------
    n128 = _round_up(N, 128)
    tile = min(tm, n128)
    if n128 // tile < 2 and n128 > 128:
        # keep the grid length >= 2 so v7x can use both TensorCores
        tile = _round_up(max(128, n128 // 2), 128)
    tile = max(128, (tile // 128) * 128)
    n_pad = _round_up(N, tile)

    # --- build transposed, lane-dense operands in the wrapper ---------------
    inputs_t = jnp.stack([x[:, 0], t[:, 0]], axis=0).astype(jnp.float32)  # (2, N)
    pad = n_pad - N
    if pad:
        inputs_t = jnp.pad(inputs_t, ((0, 0), (0, pad)))                  # (2, n_pad)

    w1t = params["w1"].T.astype(jnp.float32)            # (H, 2)
    b1c = params["b1"].reshape(H, 1).astype(jnp.float32)  # (H, 1)
    w2t = params["w2"].T.astype(jnp.float32)            # (H, H)
    b2c = params["b2"].reshape(H, 1).astype(jnp.float32)  # (H, 1)
    w3c = params["w3"].reshape(H, 1).astype(jnp.float32)  # (H, 1)
    b3c = params["b3"].reshape(1, 1).astype(jnp.float32)  # (1, 1)

    def full_spec(shape):
        # constant block index -> Pallas keeps the (tiny) operand resident in VMEM
        return pl.BlockSpec(shape, lambda i: (0, 0))

    out_slab = pl.pallas_call(
        _pinn_kernel,
        out_shape=jax.ShapeDtypeStruct((1, n_pad), jnp.float32),
        grid_spec=pltpu.PrefetchScalarGridSpec(
            num_scalar_prefetch=0,
            grid=(n_pad // tile,),
            in_specs=[
                pl.BlockSpec((2, tile), lambda i: (0, i)),   # [x; t] batch tile
                full_spec(w1t.shape),
                full_spec(b1c.shape),
                full_spec(w2t.shape),
                full_spec(b2c.shape),
                full_spec(w3c.shape),
                full_spec(b3c.shape),
            ],
            out_specs=pl.BlockSpec((1, tile), lambda i: (0, i)),
        ),
        compiler_params=pltpu.CompilerParams(
            dimension_semantics=("parallel",)),
    )(inputs_t, w1t, b1c, w2t, b2c, w3c, b3c)

    # back to the module's (N, 1) output layout
    return out_slab[0, :N].reshape(N, 1)


def _init_linear(key, fan_in, fan_out):
    # Mimic torch.nn.Linear default init: U(-1/sqrt(fan_in), 1/sqrt(fan_in)).
    kw, kb = jax.random.split(key)
    bound = 1.0 / jnp.sqrt(jnp.float32(fan_in))
    w = jax.random.uniform(kw, (fan_in, fan_out), jnp.float32, -bound, bound)
    b = jax.random.uniform(kb, (1, fan_out), jnp.float32, -bound, bound)
    return w, b


def _reference_forward(x, t, params):
    inputs = jnp.concatenate([x, t], axis=1)
    h = jnp.maximum(inputs @ params["w1"] + params["b1"], 0.0)
    h = jnp.maximum(h @ params["w2"] + params["b2"], 0.0)
    return h @ params["w3"] + params["b3"]


if __name__ == "__main__":
    # Shapes implied by the module: input_size=2 (x and t each one column),
    # hidden_sizes=[32, 32], output_size=1, batch of 512 (torch.linspace(-1,1,512)).
    N = 512
    HIDDEN = 32

    key = jax.random.PRNGKey(0)
    kx, kt, k1, k2, k3 = jax.random.split(key, 5)

    x = jnp.linspace(-1.0, 1.0, N, dtype=jnp.float32).reshape(-1, 1)
    t = jax.random.uniform(kt, (N, 1), jnp.float32, -1.0, 1.0)

    w1, b1 = _init_linear(k1, 2, HIDDEN)
    w2, b2 = _init_linear(k2, HIDDEN, HIDDEN)
    w3, b3 = _init_linear(k3, HIDDEN, 1)
    params = {"w1": w1, "b1": b1, "w2": w2, "b2": b2, "w3": w3, "b3": b3}

    out = pinn_forward(x, t, params)
    out = jax.block_until_ready(out)

    ref = _reference_forward(x, t, params)
    assert out.shape == (N, 1)
    assert jnp.allclose(out, ref, atol=1e-5, rtol=1e-5), "mismatch vs reference"

    print("KERNEL_OK")
</pallas_src>

<mosaic_0001>
module attributes {stable_mosaic.version = 11 : i64} {
  func.func @_pinn_kernel(%arg0: i32, %arg1: memref<2x256xf32, #tpu.memory_space<vmem>>, %arg2: memref<32x2xf32, #tpu.memory_space<vmem>>, %arg3: memref<32x1xf32, #tpu.memory_space<vmem>>, %arg4: memref<32x32xf32, #tpu.memory_space<vmem>>, %arg5: memref<32x1xf32, #tpu.memory_space<vmem>>, %arg6: memref<32x1xf32, #tpu.memory_space<vmem>>, %arg7: memref<1x1xf32, #tpu.memory_space<vmem>>, %arg8: memref<1x256xf32, #tpu.memory_space<vmem>>) attributes {dimension_semantics = [#tpu.dimension_semantics<parallel>], iteration_bounds = array<i64: 2>, scalar_prefetch = 0 : i64, scratch_operands = 0 : i64, tpu.core_type = #tpu.core_type<tc>, window_params = [{transform_indices = @transform_0, window_bounds = array<i64: 2, 256>}, {pipeline_mode = #tpu.pipeline_mode<synchronous>, transform_indices = @transform_1, window_bounds = array<i64: 32, 2>}, {pipeline_mode = #tpu.pipeline_mode<synchronous>, transform_indices = @transform_2, window_bounds = array<i64: 32, 1>}, {pipeline_mode = #tpu.pipeline_mode<synchronous>, transform_indices = @transform_3, window_bounds = array<i64: 32, 32>}, {pipeline_mode = #tpu.pipeline_mode<synchronous>, transform_indices = @transform_4, window_bounds = array<i64: 32, 1>}, {pipeline_mode = #tpu.pipeline_mode<synchronous>, transform_indices = @transform_5, window_bounds = array<i64: 32, 1>}, {pipeline_mode = #tpu.pipeline_mode<synchronous>, transform_indices = @transform_6, window_bounds = array<i64: 1, 1>}, {transform_indices = @transform_7, window_bounds = array<i64: 1, 256>}]} {
    %c0 = arith.constant 0 : index
    %c0_0 = arith.constant 0 : index
    %0 = vector.load %arg1[%c0, %c0_0] : memref<2x256xf32, #tpu.memory_space<vmem>>, vector<1x256xf32>
    %c1 = arith.constant 1 : index
    %c0_1 = arith.constant 0 : index
    %1 = vector.load %arg1[%c1, %c0_1] : memref<2x256xf32, #tpu.memory_space<vmem>>, vector<1x256xf32>
    %c0_2 = arith.constant 0 : index
    %c0_3 = arith.constant 0 : index
    %2 = vector.load %arg2[%c0_2, %c0_3] : memref<32x2xf32, #tpu.memory_space<vmem>>, vector<32x1xf32>
    %3 = vector.broadcast %2 : vector<32x1xf32> to vector<32x256xf32>
    %4 = vector.broadcast %0 : vector<1x256xf32> to vector<32x256xf32>
    %5 = arith.mulf %3, %4 : vector<32x256xf32>
    %c0_4 = arith.constant 0 : index
    %c1_5 = arith.constant 1 : index
    %6 = vector.load %arg2[%c0_4, %c1_5] : memref<32x2xf32, #tpu.memory_space<vmem>>, vector<32x1xf32>
    %7 = vector.broadcast %6 : vector<32x1xf32> to vector<32x256xf32>
    %8 = vector.broadcast %1 : vector<1x256xf32> to vector<32x256xf32>
    %9 = arith.mulf %7, %8 : vector<32x256xf32>
    %10 = arith.addf %5, %9 : vector<32x256xf32>
    %c0_6 = arith.constant 0 : index
    %c0_7 = arith.constant 0 : index
    %11 = vector.load %arg3[%c0_6, %c0_7] : memref<32x1xf32, #tpu.memory_space<vmem>>, vector<32x1xf32>
    %12 = vector.broadcast %11 : vector<32x1xf32> to vector<32x256xf32>
    %13 = arith.addf %10, %12 : vector<32x256xf32>
    %cst = arith.constant 0.000000e+00 : f32
    %14 = vector.broadcast %cst : f32 to vector<32x256xf32>
    %15 = arith.maximumf %13, %14 : vector<32x256xf32>
    %c0_8 = arith.constant 0 : index
    %c0_9 = arith.constant 0 : index
    %16 = vector.load %arg4[%c0_8, %c0_9] : memref<32x32xf32, #tpu.memory_space<vmem>>, vector<32x32xf32>
    %cst_10 = arith.constant dense<0.000000e+00> : vector<32x256xf32>
    %17 = tpu.matmul %16, %15, %cst_10 {dimension_numbers = #tpu.dot_dimension_numbers<[1], [0], [0], [1], [0, 0, 1, 1], [], []>} : vector<32x32xf32>, vector<32x256xf32>, vector<32x256xf32> -> vector<32x256xf32>
    %c0_11 = arith.constant 0 : index
    %c0_12 = arith.constant 0 : index
    %18 = vector.load %arg5[%c0_11, %c0_12] : memref<32x1xf32, #tpu.memory_space<vmem>>, vector<32x1xf32>
    %19 = vector.broadcast %18 : vector<32x1xf32> to vector<32x256xf32>
    %20 = arith.addf %17, %19 : vector<32x256xf32>
    %cst_13 = arith.constant 0.000000e+00 : f32
    %21 = vector.broadcast %cst_13 : f32 to vector<32x256xf32>
    %22 = arith.maximumf %20, %21 : vector<32x256xf32>
    %c0_14 = arith.constant 0 : index
    %c0_15 = arith.constant 0 : index
    %23 = vector.load %arg6[%c0_14, %c0_15] : memref<32x1xf32, #tpu.memory_space<vmem>>, vector<32x1xf32>
    %24 = vector.broadcast %23 : vector<32x1xf32> to vector<32x256xf32>
    %25 = arith.mulf %24, %22 : vector<32x256xf32>
    %cst_16 = arith.constant dense<0.000000e+00> : vector<256xf32>
    %26 = vector.multi_reduction <add>, %25, %cst_16 [0] : vector<32x256xf32> to vector<256xf32>
    %27 = vector.shape_cast %26 : vector<256xf32> to vector<1x256xf32>
    %c0_17 = arith.constant 0 : index
    %c0_18 = arith.constant 0 : index
    %28 = vector.load %arg7[%c0_17, %c0_18] : memref<1x1xf32, #tpu.memory_space<vmem>>, vector<1x1xf32>
    %29 = vector.broadcast %28 : vector<1x1xf32> to vector<1x256xf32>
    %30 = arith.addf %27, %29 : vector<1x256xf32>
    %c0_19 = arith.constant 0 : index
    %c0_20 = arith.constant 0 : index
    %31 = vector.load %arg8[%c0_19, %c0_20] : memref<1x256xf32, #tpu.memory_space<vmem>>, vector<1x256xf32>
    tpu.vector_store %arg8[%c0_19, %c0_20], %30 {strides = array<i32>} : memref<1x256xf32, #tpu.memory_space<vmem>>, vector<1x256xf32>,
    return
  }
  func.func @transform_0(%arg0: i32) -> (i32, i32) {
    %c0_i32 = arith.constant 0 : i32
    %c0_i32_0 = arith.constant 0 : i32
    return %c0_i32, %arg0 : i32, i32
  }
  func.func @transform_1(%arg0: i32) -> (i32, i32) {
    %c0_i32 = arith.constant 0 : i32
    %c0_i32_0 = arith.constant 0 : i32
    %c0_i32_1 = arith.constant 0 : i32
    return %c0_i32, %c0_i32_0 : i32, i32
  }
  func.func @transform_2(%arg0: i32) -> (i32, i32) {
    %c0_i32 = arith.constant 0 : i32
    %c0_i32_0 = arith.constant 0 : i32
    %c0_i32_1 = arith.constant 0 : i32
    return %c0_i32, %c0_i32_0 : i32, i32
  }
  func.func @transform_3(%arg0: i32) -> (i32, i32) {
    %c0_i32 = arith.constant 0 : i32
    %c0_i32_0 = arith.constant 0 : i32
    %c0_i32_1 = arith.constant 0 : i32
    return %c0_i32, %c0_i32_0 : i32, i32
  }
  func.func @transform_4(%arg0: i32) -> (i32, i32) {
    %c0_i32 = arith.constant 0 : i32
    %c0_i32_0 = arith.constant 0 : i32
    %c0_i32_1 = arith.constant 0 : i32
    return %c0_i32, %c0_i32_0 : i32, i32
  }
  func.func @transform_5(%arg0: i32) -> (i32, i32) {
    %c0_i32 = arith.constant 0 : i32
    %c0_i32_0 = arith.constant 0 : i32
    %c0_i32_1 = arith.constant 0 : i32
    return %c0_i32, %c0_i32_0 : i32, i32
  }
  func.func @transform_6(%arg0: i32) -> (i32, i32) {
    %c0_i32 = arith.constant 0 : i32
    %c0_i32_0 = arith.constant 0 : i32
    %c0_i32_1 = arith.constant 0 : i32
    return %c0_i32, %c0_i32_0 : i32, i32
  }
  func.func @transform_7(%arg0: i32) -> (i32, i32) {
    %c0_i32 = arith.constant 0 : i32
    %c0_i32_0 = arith.constant 0 : i32
    return %c0_i32, %arg0 : i32, i32
  }
}

</mosaic_0001>

<llo_original>
// kernel: pinn_forward.1
$region0: #{pinn_forward.1}
  #allocation0 [shape = 'u32[]', space=smem, size = 0x4, offset = 0x4, fixed_abs, tag = 'smem constant byte address 0x4 - core index']
  #allocation1 [shape = 'u32[144,128]{1,0:T(1,128)}', space=vmem, size = 0x12000, scoped, tag = 'internal scratch']
  #allocation2 [shape = 'f32[1,1]{1,0:T(1,128)S(1)}', space=vmem, size = 0x200, scoped, tag = 'scoped memory for pinn_forward.1']
  %s0 = inlined_call_operand.vmem [shape: f32[2,512], index: 0, kind: input, shape index: {}]
  %s1 = inlined_call_operand.vmem [shape: f32[32,2], index: 1, kind: input, shape index: {}]
  %s2 = inlined_call_operand.vmem [shape: f32[32,1], index: 2, kind: input, shape index: {}]
  %s3 = inlined_call_operand.vmem [shape: f32[32,32], index: 3, kind: input, shape index: {}]
  %s4 = inlined_call_operand.vmem [shape: f32[32,1], index: 4, kind: input, shape index: {}]
  %s5 = inlined_call_operand.vmem [shape: f32[32,1], index: 5, kind: input, shape index: {}]
  %s6 = inlined_call_operand.<no memory space> [shape: f32[1,1], index: 6, kind: input, shape index: {}]
  %s7 = inlined_call_operand.hbm [shape: f32[1,512], index: 7, kind: output, shape index: {}]
  %s8 = sld [smem:[#allocation0]]
  $region61: #{pinn_forward.1} parent=0
    _
  %s10 = ssub.s32 1, %s8
  %s11 = scalar_select 0, %s10, %s8
  %v12 = vstv %s6
  %13 = vst [vmem:[#allocation2] sm:$0x1] %v12
  $region1: #{pinn_forward.1} parent=0
    #allocation3 [shape = 'u8[2048]{0}', space=vmem, size = 0x800, scoped, tag = 'output window, operand 0']
    #allocation4 [shape = 's32[2]{0}', space=sflag, size = 0x8, scoped, tag = 'scoped memory for pinn_forward.1']
    %14 = vsyncpa [#allocation4], 0
    %s15 = scalar_lea.sflag [#allocation4], 1
    %16 = vsyncpa %s15, 0
    loop: start=0, step=1, limit=4
    $region2: #{pinn_forward.1} parent=1 // loop_pre_header
      _
    $region3: #{pinn_forward.1} parent=1 // loop_header
      %s18 = sphi 0, %s22
      %p19 = scmp.ge.s32.totalorder %s18, 4
      %s28 = sphi 0, %s30
      %s31 = sphi 0, %s28
      %s32 = sphi 0, %s31
      %s48 = sphi 0, %s32
      %s52 = sphi 0, %s52
      %s54 = sphi 0, %s52
      %s55 = sphi 0, %s54
      %s69 = sphi 0, %s55
      %s73 = sphi 0, %s73
      %s75 = sphi 0, %s73
      %s76 = sphi 0, %s75
      %s90 = sphi 0, %s76
      %s94 = sphi 0, %s94
      %s96 = sphi 0, %s94
      %s97 = sphi 0, %s96
      %s111 = sphi 0, %s97
      %s115 = sphi 0, %s115
      %s117 = sphi 0, %s115
      %s118 = sphi 0, %s117
      %s132 = sphi 0, %s118
      %s136 = sphi 0, %s136
      %s138 = sphi 0, %s136
      %s139 = sphi 0, %s138
      %s153 = sphi 0, %s139
      %s157 = sphi 0, %s157
      %s159 = sphi 0, %s157
      %s160 = sphi 0, %s159
      %s174 = sphi 0, %s160
      %s180 = sphi 0, %s182
      %s183 = sphi 0, %s180
      %s184 = sphi 0, %s183
      %s200 = sphi 0, %s184
    $region4: #{pinn_forward.1} parent=1 // loop_header_branch
      %21 = sbr.rel (%p19) target = $region8
    $region5: #{pinn_forward.1} parent=1 // loop_body
      %s23 = ssub.s32 %s18, 1
      %s24 = ssub.s32 %s18, 2
      %s25 = sadd.s32 %s18, 1
      %s26 = ssub.s32 %s18, %s25
      %p27 = scmp.eq.s32.totalorder %s26, 0
      %s29 = sadd.s32 %s28, 1
      %s30 = scalar_select %p27, %s28, %s29
      %p33 = pneg %p27
      %p34 = scmp.eq.s32.totalorder %s18, 1
      %p35 = por %p33, %p34
      %p36 = scmp.ne.s32.totalorder %s28, %s31
      %p37 = scmp.eq.s32.totalorder %s18, 0
      %p38 = por %p36, %p37
      %p39 = scmp.ne.s32.totalorder %s28, %s31
      %p40 = scmp.eq.s32.totalorder %s23, 1
      %p41 = por %p39, %p40
      %p42 = scmp.ne.s32.totalorder %s31, %s32
      %p43 = scmp.eq.s32.totalorder %s23, 0
      %p44 = por %p42, %p43
      %p45 = scmp.ne.s32.totalorder %s31, %s32
      %p46 = scmp.eq.s32.totalorder %s24, 1
      %p47 = por %p45, %p46
      %p49 = scmp.ne.s32.totalorder %s32, %s48
      %p50 = scmp.eq.s32.totalorder %s24, 0
      %p51 = por %p49, %p50
      %s53 = sadd.s32 %s52, 1
      %p56 = scmp.eq.s32.totalorder %s18, 1
      %p57 = scmp.ne.s32.totalorder %s52, %s54
      %p58 = scmp.eq.s32.totalorder %s18, 0
      %p59 = por %p57, %p58
      %p60 = scmp.ne.s32.totalorder %s52, %s54
      %p61 = scmp.eq.s32.totalorder %s23, 1
      %p62 = por %p60, %p61
      %p63 = scmp.ne.s32.totalorder %s54, %s55
      %p64 = scmp.eq.s32.totalorder %s23, 0
      %p65 = por %p63, %p64
      %p66 = scmp.ne.s32.totalorder %s54, %s55
      %p67 = scmp.eq.s32.totalorder %s24, 1
      %p68 = por %p66, %p67
      %p70 = scmp.ne.s32.totalorder %s55, %s69
      %p71 = scmp.eq.s32.totalorder %s24, 0
      %p72 = por %p70, %p71
      %s74 = sadd.s32 %s73, 1
      %p77 = scmp.eq.s32.totalorder %s18, 1
      %p78 = scmp.ne.s32.totalorder %s73, %s75
      %p79 = scmp.eq.s32.totalorder %s18, 0
      %p80 = por %p78, %p79
      %p81 = scmp.ne.s32.totalorder %s73, %s75
      %p82 = scmp.eq.s32.totalorder %s23, 1
      %p83 = por %p81, %p82
      %p84 = scmp.ne.s32.totalorder %s75, %s76
      %p85 = scmp.eq.s32.totalorder %s23, 0
      %p86 = por %p84, %p85
      %p87 = scmp.ne.s32.totalorder %s75, %s76
      %p88 = scmp.eq.s32.totalorder %s24, 1
      %p89 = por %p87, %p88
      %p91 = scmp.ne.s32.totalorder %s76, %s90
      %p92 = scmp.eq.s32.totalorder %s24, 0
      %p93 = por %p91, %p92
      %s95 = sadd.s32 %s94, 1
      %p98 = scmp.eq.s32.totalorder %s18, 1
      %p99 = scmp.ne.s32.totalorder %s94, %s96
      %p100 = scmp.eq.s32.totalorder %s18, 0
      %p101 = por %p99, %p100
      %p102 = scmp.ne.s32.totalorder %s94, %s96
      %p103 = scmp.eq.s32.totalorder %s23, 1
      %p104 = por %p102, %p103
      %p105 = scmp.ne.s32.totalorder %s96, %s97
      %p106 = scmp.eq.s32.totalorder %s23, 0
      %p107 = por %p105, %p106
      %p108 = scmp.ne.s32.totalorder %s96, %s97
      %p109 = scmp.eq.s32.totalorder %s24, 1
      %p110 = por %p108, %p109
      %p112 = scmp.ne.s32.totalorder %s97, %s111
      %p113 = scmp.eq.s32.totalorder %s24, 0
      %p114 = por %p112, %p113
      %s116 = sadd.s32 %s115, 1
      %p119 = scmp.eq.s32.totalorder %s18, 1
      %p120 = scmp.ne.s32.totalorder %s115, %s117
      %p121 = scmp.eq.s32.totalorder %s18, 0
      %p122 = por %p120, %p121
      %p123 = scmp.ne.s32.totalorder %s115, %s117
      %p124 = scmp.eq.s32.totalorder %s23, 1
      %p125 = por %p123, %p124
      %p126 = scmp.ne.s32.totalorder %s117, %s118
      %p127 = scmp.eq.s32.totalorder %s23, 0
      %p128 = por %p126, %p127
      %p129 = scmp.ne.s32.totalorder %s117, %s118
      %p130 = scmp.eq.s32.totalorder %s24, 1
      %p131 = por %p129, %p130
      %p133 = scmp.ne.s32.totalorder %s118, %s132
      %p134 = scmp.eq.s32.totalorder %s24, 0
      %p135 = por %p133, %p134
      %s137 = sadd.s32 %s136, 1
      %p140 = scmp.eq.s32.totalorder %s18, 1
      %p141 = scmp.ne.s32.totalorder %s136, %s138
      %p142 = scmp.eq.s32.totalorder %s18, 0
      %p143 = por %p141, %p142
      %p144 = scmp.ne.s32.totalorder %s136, %s138
      %p145 = scmp.eq.s32.totalorder %s23, 1
      %p146 = por %p144, %p145
      %p147 = scmp.ne.s32.totalorder %s138, %s139
      %p148 = scmp.eq.s32.totalorder %s23, 0
      %p149 = por %p147, %p148
      %p150 = scmp.ne.s32.totalorder %s138, %s139
      %p151 = scmp.eq.s32.totalorder %s24, 1
      %p152 = por %p150, %p151
      %p154 = scmp.ne.s32.totalorder %s139, %s153
      %p155 = scmp.eq.s32.totalorder %s24, 0
      %p156 = por %p154, %p155
      %s158 = sadd.s32 %s157, 1
      %p161 = scmp.eq.s32.totalorder %s18, 1
      %p162 = scmp.ne.s32.totalorder %s157, %s159
      %p163 = scmp.eq.s32.totalorder %s18, 0
      %p164 = por %p162, %p163
      %p165 = scmp.ne.s32.totalorder %s157, %s159
      %p166 = scmp.eq.s32.totalorder %s23, 1
      %p167 = por %p165, %p166
      %p168 = scmp.ne.s32.totalorder %s159, %s160
      %p169 = scmp.eq.s32.totalorder %s23, 0
      %p170 = por %p168, %p169
      %p171 = scmp.ne.s32.totalorder %s159, %s160
      %p172 = scmp.eq.s32.totalorder %s24, 1
      %p173 = por %p171, %p172
      %p175 = scmp.ne.s32.totalorder %s160, %s174
      %p176 = scmp.eq.s32.totalorder %s24, 0
      %p177 = por %p175, %p176
      %s178 = ssub.s32 %s18, %s25
      %p179 = scmp.eq.s32.totalorder %s178, 0
      %s181 = sadd.s32 %s180, 1
      %s182 = scalar_select %p179, %s180, %s181
      %p185 = pneg %p179
      %p186 = scmp.eq.s32.totalorder %s18, 1
      %p187 = por %p185, %p186
      %p188 = scmp.ne.s32.totalorder %s180, %s183
      %p189 = scmp.eq.s32.totalorder %s18, 0
      %p190 = por %p188, %p189
      %p191 = scmp.ne.s32.totalorder %s180, %s183
      %p192 = scmp.eq.s32.totalorder %s23, 1
      %p193 = por %p191, %p192
      %p194 = scmp.ne.s32.totalorder %s183, %s184
      %p195 = scmp.eq.s32.totalorder %s23, 0
      %p196 = por %p194, %p195
      %p197 = scmp.ne.s32.totalorder %s183, %s184
      %p198 = scmp.eq.s32.totalorder %s24, 1
      %p199 = por %p197, %p198
      %p201 = scmp.ne.s32.totalorder %s184, %s200
      %p202 = scmp.eq.s32.totalorder %s24, 0
      %p203 = por %p201, %p202
      %p204 = scmp.le.s32.totalorder 1, %s18
      %p205 = scmp.lt.s32.totalorder %s18, 3
      %p206 = pnand %p204, %p205
      %p207 = pneg %p206
      // Predicated region
      $region9: #{pinn_forward.1} parent=5 // pred_check
        _
      $region10: #{pinn_forward.1} parent=5 // pred_check_branch
        %209 = sbr.rel (%p206) target = $region12
      $region11: #{pinn_forward.1} parent=5 // pred_region
        %s210 = ssub.s32 %s18, 1
        // Predicated region
        $region13: #{pinn_forward.1} parent=11 // pred_check
          %p211 = pneg %p65
        $region14: #{pinn_forward.1} parent=11 // pred_check_branch
          %213 = sbr.rel (%p211) target = $region16
        $region15: #{pinn_forward.1} parent=11 // pred_region
          _
        $region16: #{pinn_forward.1} parent=11 // pred_fallthru
          _
        // Predicated region
        $region17: #{pinn_forward.1} parent=11 // pred_check
          %p214 = pneg %p86
        $region18: #{pinn_forward.1} parent=11 // pred_check_branch
          %216 = sbr.rel (%p214) target = $region20
        $region19: #{pinn_forward.1} parent=11 // pred_region
          _
        $region20: #{pinn_forward.1} parent=11 // pred_fallthru
          _
        // Predicated region
        $region21: #{pinn_forward.1} parent=11 // pred_check
          %p217 = pneg %p107
        $region22: #{pinn_forward.1} parent=11 // pred_check_branch
          %219 = sbr.rel (%p217) target = $region24
        $region23: #{pinn_forward.1} parent=11 // pred_region
          _
        $region24: #{pinn_forward.1} parent=11 // pred_fallthru
          _
        // Predicated region
        $region25: #{pinn_forward.1} parent=11 // pred_check
          %p220 = pneg %p128
        $region26: #{pinn_forward.1} parent=11 // pred_check_branch
          %222 = sbr.rel (%p220) target = $region28
        $region27: #{pinn_forward.1} parent=11 // pred_region
          _
        $region28: #{pinn_forward.1} parent=11 // pred_fallthru
          _
        // Predicated region
        $region29: #{pinn_forward.1} parent=11 // pred_check
          %p223 = pneg %p149
        $region30: #{pinn_forward.1} parent=11 // pred_check_branch
          %225 = sbr.rel (%p223) target = $region32
        $region31: #{pinn_forward.1} parent=11 // pred_region
          _
        $region32: #{pinn_forward.1} parent=11 // pred_fallthru
          _
        // Predicated region
        $region33: #{pinn_forward.1} parent=11 // pred_check
          %p226 = pneg %p170
        $region34: #{pinn_forward.1} parent=11 // pred_check_branch
          %228 = sbr.rel (%p226) target = $region36
        $region35: #{pinn_forward.1} parent=11 // pred_region
          _
        $region36: #{pinn_forward.1} parent=11 // pred_fallthru
          _
      $region12: #{pinn_forward.1} parent=5 // pred_fallthru
        _
      %p229 = scmp.lt.s32.totalorder %s18, 2
      // Predicated region
      $region37: #{pinn_forward.1} parent=5 // pred_check
        %p230 = pneg %p229
      $region38: #{pinn_forward.1} parent=5 // pred_check_branch
        %232 = sbr.rel (%p230) target = $region40
      $region39: #{pinn_forward.1} parent=5 // pred_region
        // Predicated region
        $region41: #{pinn_forward.1} parent=39 // pred_check
          %p233 = pneg %p38
        $region42: #{pinn_forward.1} parent=39 // pred_check_branch
          %235 = sbr.rel (%p233) target = $region44
        $region43: #{pinn_forward.1} parent=39 // pred_region
          %s236 = smul.u32 2, %s18
          %p237 = scmp.lt.s32.totalorder %s236, 3
          %s238 = scalar_select %p237, %s236, 3
          %s239 = smul.addr %s238, 2
          %s240 = scalar_lea.vmem %s0, %s239
          %s241 = smul.u32 2, %s18
        $region44: #{pinn_forward.1} parent=39 // pred_fallthru
          _
      $region40: #{pinn_forward.1} parent=5 // pred_fallthru
        _
      %p242 = scmp.le.s32.totalorder 1, %s18
      %p243 = scmp.lt.s32.totalorder %s18, 3
      %p244 = pnand %p242, %p243
      %p245 = pneg %p244
      // Predicated region
      $region45: #{pinn_forward.1} parent=5 // pred_check
        _
      $region46: #{pinn_forward.1} parent=5 // pred_check_branch
        %247 = sbr.rel (%p244) target = $region48
      $region47: #{pinn_forward.1} parent=5 // pred_region
        %s248 = ssub.s32 %s18, 1
        %s249 = smul.u32 2, %s23
        %p250 = scmp.lt.s32.totalorder %s249, 3
        %s251 = scalar_select %p250, %s249, 3
        %s252 = smul.addr %s251, 2
        %s253 = scalar_lea.vmem %s0, %s252
        %p254 = pneg %p44
        %p255 = pneg %p41
        %p256 = pneg %p65
        %p257 = pneg %p62
        %p258 = pneg %p86
        %p259 = pneg %p83
        %p260 = pneg %p107
        %p261 = pneg %p104
        %p262 = pneg %p128
        %p263 = pneg %p125
        %p264 = pneg %p149
        %p265 = pneg %p146
        %p266 = pneg %p170
        %p267 = pneg %p167
        %p268 = pneg %p196
        %p269 = pneg %p193
        %s270 = sand.u32 %s183, 1
        %s271 = scalar_lea.sflag [#allocation4], %s270
        %s272 = sand.u32 %s183, 1
        %s273 = smul.addr %s272, 2
        %s274 = scalar_lea.vmem [#allocation3], %s273
        %s275 = smul.u32 2, %s23
        %p276 = scmp.lt.s32.totalorder %s275, 3
        %s277 = scalar_select %p276, %s275, 3
        %s278 = smul.addr %s277, 2
        %s279 = scalar_lea.vmem %s0, %s278
        %s280 = smul.u32 2, %s23
        %s281 = smul.u32 2, %s23
        %v282 = vld [vmem:[%s279] ss:$2 sm:$0x3]
        %s283 = scalar_lea.vmem %s279, 1
        %v284 = vld [vmem:[%s283] ss:$2 sm:$0x3]
        %v285 = vld [vmem:[%s1] sm:$0xff]
        %v286 = vld [vmem:[%s1 + $0x8] sm:$0xff]
        %v287 = vld [vmem:[%s1 + $0x10] sm:$0xff]
        %v288 = vld [vmem:[%s1 + $0x18] sm:$0xff]
        %290 = vset.pattern.permute.xlu0 0
        %291 = vperm.xlu0 %290, %v285
        %v292 = vpop.permute.xlu0 %291
        %295 = vset.pattern.permute.xlu0 0
        %296 = vperm.xlu0 %295, %v286
        %v297 = vpop.permute.xlu0 %296
        %300 = vset.pattern.permute.xlu0 0
        %301 = vperm.xlu0 %300, %v287
        %v302 = vpop.permute.xlu0 %301
        %305 = vset.pattern.permute.xlu0 0
        %306 = vperm.xlu0 %305, %v288
        %v307 = vpop.permute.xlu0 %306
        %v310 = vlaneseq
        %v311 = vshrl.u32 %v310, 7
        %v312 = vsub.s32 0, %v311
        %v313 = vrot.slane %v282, %v312
        %v314 = vlaneseq
        %v315 = vshrl.u32 %v314, 7
        %v316 = vsub.s32 1, %v315
        %v317 = vrot.slane %v282, %v316
        %v320 = vmul.f32 %v292, %v313
        %v321 = vmul.f32 %v292, %v317
        %v322 = vmul.f32 %v297, %v313
        %v323 = vmul.f32 %v297, %v317
        %v324 = vmul.f32 %v302, %v313
        %v325 = vmul.f32 %v302, %v317
        %v326 = vmul.f32 %v307, %v313
        %v327 = vmul.f32 %v307, %v317
        %328 = vset.pattern.permute.xlu0 1
        %329 = vperm.xlu0 %328, %v285
        %v330 = vpop.permute.xlu0 %329
        %332 = vset.pattern.permute.xlu0 1
        %333 = vperm.xlu0 %332, %v286
        %v334 = vpop.permute.xlu0 %333
        %336 = vset.pattern.permute.xlu0 1
        %337 = vperm.xlu0 %336, %v287
        %v338 = vpop.permute.xlu0 %337
        %340 = vset.pattern.permute.xlu0 1
        %341 = vperm.xlu0 %340, %v288
        %v342 = vpop.permute.xlu0 %341
        %v345 = vlaneseq
        %v346 = vshrl.u32 %v345, 7
        %v347 = vsub.s32 0, %v346
        %v348 = vrot.slane %v284, %v347
        %v349 = vlaneseq
        %v350 = vshrl.u32 %v349, 7
        %v351 = vsub.s32 1, %v350
        %v352 = vrot.slane %v284, %v351
        %v355 = vmul.f32 %v330, %v348
        %v356 = vmul.f32 %v330, %v352
        %v357 = vmul.f32 %v334, %v348
        %v358 = vmul.f32 %v334, %v352
        %v359 = vmul.f32 %v338, %v348
        %v360 = vmul.f32 %v338, %v352
        %v361 = vmul.f32 %v342, %v348
        %v362 = vmul.f32 %v342, %v352
        %v363 = vadd.f32 %v320, %v355
        %v364 = vadd.f32 %v321, %v356
        %v365 = vadd.f32 %v322, %v357
        %v366 = vadd.f32 %v323, %v358
        %v367 = vadd.f32 %v324, %v359
        %v368 = vadd.f32 %v325, %v360
        %v369 = vadd.f32 %v326, %v361
        %v370 = vadd.f32 %v327, %v362
        %v371 = vld [vmem:[%s2] sm:$0xff]
        %v372 = vld [vmem:[%s2 + $0x8] sm:$0xff]
        %v373 = vld [vmem:[%s2 + $0x10] sm:$0xff]
        %v374 = vld [vmem:[%s2 + $0x18] sm:$0xff]
        %376 = vset.pattern.permute.xlu0 0
        %377 = vperm.xlu0 %376, %v371
        %v378 = vpop.permute.xlu0 %377
        %381 = vset.pattern.permute.xlu0 0
        %382 = vperm.xlu0 %381, %v372
        %v383 = vpop.permute.xlu0 %382
        %386 = vset.pattern.permute.xlu0 0
        %387 = vperm.xlu0 %386, %v373
        %v388 = vpop.permute.xlu0 %387
        %391 = vset.pattern.permute.xlu0 0
        %392 = vperm.xlu0 %391, %v374
        %v393 = vpop.permute.xlu0 %392
        %v395 = vadd.f32 %v363, %v378
        %v396 = vadd.f32 %v364, %v378
        %v397 = vadd.f32 %v365, %v383
        %v398 = vadd.f32 %v366, %v383
        %v399 = vadd.f32 %v367, %v388
        %v400 = vadd.f32 %v368, %v388
        %v401 = vadd.f32 %v369, %v393
        %v402 = vadd.f32 %v370, %v393
        %v403 = vmax.f32 %v395, 0.0
        %v404 = vmax.f32 %v396, 0.0
        %v405 = vmax.f32 %v397, 0.0
        %v406 = vmax.f32 %v398, 0.0
        %v407 = vmax.f32 %v399, 0.0
        %v408 = vmax.f32 %v400, 0.0
        %v409 = vmax.f32 %v401, 0.0
        %v410 = vmax.f32 %v402, 0.0
        %v411 = vld [vmem:[%s3] sm:$0xff]
        %v412 = vld [vmem:[%s3 + $0x8] sm:$0xff]
        %v413 = vld [vmem:[%s3 + $0x10] sm:$0xff]
        %v414 = vld [vmem:[%s3 + $0x18] sm:$0xff]
        %v415 = vld [vmem:[%s4] sm:$0xff]
        %v416 = vld [vmem:[%s4 + $0x8] sm:$0xff]
        %v417 = vld [vmem:[%s4 + $0x10] sm:$0xff]
        %v418 = vld [vmem:[%s4 + $0x18] sm:$0xff]
        %420 = vset.pattern.permute.xlu0 0
        %421 = vperm.xlu0 %420, %v415
        %v422 = vpop.permute.xlu0 %421
        %425 = vset.pattern.permute.xlu0 0
        %426 = vperm.xlu0 %425, %v416
        %v427 = vpop.permute.xlu0 %426
        %430 = vset.pattern.permute.xlu0 0
        %431 = vperm.xlu0 %430, %v417
        %v432 = vpop.permute.xlu0 %431
        %435 = vset.pattern.permute.xlu0 0
        %436 = vperm.xlu0 %435, %v418
        %v437 = vpop.permute.xlu0 %436
        %vm439 = vcmask 261120
        %v441 = vsel %vm439, %v411, 0
        %v444 = vsel %vm439, %v412, 0
        %v447 = vsel %vm439, %v413, 0
        %v450 = vsel %vm439, %v414, 0
        %452 = vmatprep.subr.mxu0 %v404
        %453 = vmatpush1.msra.mxu0 %v403
        %454 = vmatprep.subr.mxu0 %v406
        %455 = vmatpush1.msra.mxu0 %v405
        %456 = vmatprep.subr.mxu0 %v408
        %457 = vmatpush1.msra.mxu0 %v407
        %458 = vmatprep.subr.mxu0 %v410
        %459 = vmatpush1.msra.mxu0 %v409
        %460 = vmatprep.subr.mxu0 0.0
        %461 = vmatpush1.msra.mxu0 0.0
        %462 = vmatprep.subr.mxu0 0.0
        %463 = vmatpush1.msra.mxu0 0.0
        %464 = vmatprep.subr.mxu0 0.0
        %465 = vmatpush1.msra.mxu0 0.0
        %466 = vmatprep.subr.mxu0 0.0
        %467 = vmatpush1.msra.mxu0 0.0
        %468 = vmatprep.subr.mxu0 0.0
        %469 = vmatpush1.msra.mxu0 0.0
        %470 = vmatprep.subr.mxu0 0.0
        %471 = vmatpush1.msra.mxu0 0.0
        %472 = vmatprep.subr.mxu0 0.0
        %473 = vmatpush1.msra.mxu0 0.0
        %474 = vmatprep.subr.mxu0 0.0
        %475 = vmatpush1.msra.mxu0 0.0
        %476 = vmatprep.subr.mxu0 0.0
        %477 = vmatpush1.msra.mxu0 0.0
        %478 = vmatprep.subr.mxu0 0.0
        %479 = vmatpush1.msra.mxu0 0.0
        %480 = vmatprep.subr.mxu0 0.0
        %481 = vmatpush1.msra.mxu0 0.0
        %482 = vmatprep.subr.mxu0 0.0
        %483 = vmatpush1.msra.mxu0 0.0
        %484 = vmatprep.subr.mxu0 0.0
        %485 = vmatpush1.msra.mxu0 0.0
        %486 = vmatprep.subr.mxu0 0.0
        %487 = vmatpush1.msra.mxu0 0.0
        %488 = vmatprep.subr.mxu0 0.0
        %489 = vmatpush1.msra.mxu0 0.0
        %490 = vmatprep.subr.mxu0 0.0
        %491 = vmatpush1.msra.mxu0 0.0
        %492 = vmatprep.subr.mxu0 0.0
        %493 = vmatpush1.msra.mxu0 0.0
        %494 = vmatprep.subr.mxu0 0.0
        %495 = vmatpush1.msra.mxu0 0.0
        %496 = vmatprep.subr.mxu0 0.0
        %497 = vmatpush1.msra.mxu0 0.0
        %498 = vmatprep.subr.mxu0 0.0
        %499 = vmatpush1.msra.mxu0 0.0
        %500 = vmatprep.subr.mxu0 0.0
        %501 = vmatpush1.msra.mxu0 0.0
        %502 = vmatprep.subr.mxu0 0.0
        %503 = vmatpush1.msra.mxu0 0.0
        %504 = vmatprep.subr.mxu0 0.0
        %505 = vmatpush1.msra.mxu0 0.0
        %506 = vmatprep.subr.mxu0 0.0
        %507 = vmatpush1.msra.mxu0 0.0
        %508 = vmatprep.subr.mxu0 0.0
        %509 = vmatpush1.msra.mxu0 0.0
        %510 = vmatprep.subr.mxu0 0.0
        %511 = vmatpush1.msra.mxu0 0.0
        %512 = vmatprep.subr.mxu0 0.0
        %513 = vmatpush1.msra.mxu0 0.0
        %514 = vmatprep.subr.mxu0 0.0
        %515 = vmatpush1.msra.mxu0 0.0
        %516 = vmatprep.mubr.f32.mxu0 0.0
        %517 = vmatmul.mubr.f32.gmra.mrb[0].mxu0 %v441
        %v518 = vpop.f32.mrb[0].mxu0
        %v519 = vadd.f32 %v422, %v518
        %v520 = vpop.f32.mrb[0].mxu0
        %v521 = vadd.f32 %v422, %v520
        %522 = vmatprep.mubr.f32.mxu0 0.0
        %523 = vmatmul.mubr.f32.gmra.mrb[0].mxu0 %v444
        %v524 = vpop.f32.mrb[0].mxu0
        %v525 = vadd.f32 %v427, %v524
        %v526 = vpop.f32.mrb[0].mxu0
        %v527 = vadd.f32 %v427, %v526
        %528 = vmatprep.mubr.f32.mxu0 0.0
        %529 = vmatmul.mubr.f32.gmra.mrb[0].mxu0 %v447
        %v530 = vpop.f32.mrb[0].mxu0
        %v531 = vadd.f32 %v432, %v530
        %v532 = vpop.f32.mrb[0].mxu0
        %v533 = vadd.f32 %v432, %v532
        %534 = vmatprep.mubr.f32.mxu0 0.0
        %535 = vmatmul.mubr.f32.gmra.mrb[0].mxu0 %v450
        %v536 = vpop.f32.mrb[0].mxu0
        %v537 = vadd.f32 %v437, %v536
        %v538 = vpop.f32.mrb[0].mxu0
        %v539 = vadd.f32 %v437, %v538
        %540 = vdwg.mxu0
        %v541 = vmax.f32 %v519, 0.0
        %v542 = vmax.f32 %v521, 0.0
        %v543 = vmax.f32 %v525, 0.0
        %v544 = vmax.f32 %v527, 0.0
        %v545 = vmax.f32 %v531, 0.0
        %v546 = vmax.f32 %v533, 0.0
        %v547 = vmax.f32 %v537, 0.0
        %v548 = vmax.f32 %v539, 0.0
        %v549 = vld [vmem:[%s5] sm:$0xff]
        %v550 = vld [vmem:[%s5 + $0x8] sm:$0xff]
        %v551 = vld [vmem:[%s5 + $0x10] sm:$0xff]
        %v552 = vld [vmem:[%s5 + $0x18] sm:$0xff]
        %554 = vset.pattern.permute.xlu0 0
        %555 = vperm.xlu0 %554, %v549
        %v556 = vpop.permute.xlu0 %555
        %559 = vset.pattern.permute.xlu0 0
        %560 = vperm.xlu0 %559, %v550
        %v561 = vpop.permute.xlu0 %560
        %564 = vset.pattern.permute.xlu0 0
        %565 = vperm.xlu0 %564, %v551
        %v566 = vpop.permute.xlu0 %565
        %569 = vset.pattern.permute.xlu0 0
        %570 = vperm.xlu0 %569, %v552
        %v571 = vpop.permute.xlu0 %570
        %v573 = vmul.f32 %v556, %v541
        %v574 = vmul.f32 %v556, %v542
        %v575 = vmul.f32 %v561, %v543
        %v576 = vmul.f32 %v561, %v544
        %v577 = vmul.f32 %v566, %v545
        %v578 = vmul.f32 %v566, %v546
        %v579 = vmul.f32 %v571, %v547
        %v580 = vmul.f32 %v571, %v548
        %v581 = vadd.f32 %v573, %v575
        %v582 = vadd.f32 %v581, %v577
        %v583 = vadd.f32 %v582, %v579
        %v584 = vrot.slane %v583, 4
        %v585 = vadd.f32 %v583, %v584
        %v586 = vrot.slane %v585, 2
        %v587 = vadd.f32 %v585, %v586
        %v588 = vrot.slane %v587, 1
        %v589 = vadd.f32 %v587, %v588
        %v590 = vadd.f32 %v574, %v576
        %v591 = vadd.f32 %v590, %v578
        %v592 = vadd.f32 %v591, %v580
        %v593 = vrot.slane %v592, 4
        %v594 = vadd.f32 %v592, %v593
        %v595 = vrot.slane %v594, 2
        %v596 = vadd.f32 %v594, %v595
        %v597 = vrot.slane %v596, 1
        %v598 = vadd.f32 %v596, %v597
        %v599 = vld [vmem:[#allocation2] sm:$0x1]
        %601 = vset.pattern.permute.xlu0 0
        %602 = vperm.xlu0 %601, %v599
        %v603 = vpop.permute.xlu0 %602
        %v605 = vlaneseq
        %v606 = vshrl.u32 %v605, 7
        %v607 = vsub.s32 0, %v606
        %v608 = vrot.slane %v603, %v607
        %v609 = vadd.f32 %v589, %v608
        %v610 = vadd.f32 %v598, %v608
        %v613 = vcombine.low %v609, %v610
        %v615 = vunpack.c.l.s4 1966171168
        %v616 = vunpack.c.0.s8 %v615
        %v617 = vlaneseq
        %v618 = vshrl.u32 %v617, 7
        %v619 = vsub.s32 %v616, %v618
        %v620 = vrot.slane %v613, %v619
        %v622 = vunpack.c.l.s4 1966171168
        %v623 = vunpack.c.0.s8 %v622
        %v624 = vlaneseq
        %v625 = vshrl.u32 %v624, 7
        %v626 = vsub.s32 %v623, %v625
        %v627 = vrot.slane %v620, %v626
        %v629 = vlaneseq
        %vm630 = vcmp.ge.s32.totalorder %v629, 0
        %vm631 = vcmp.lt.s32.totalorder %v629, 256
        %vm632 = vmand %vm630, %vm631
        %633 = vst.msk [vmem:[%s274] sm:$0x3] %vm632, %v627
        %s634 = sand.u32 %s183, 1
        %s635 = scalar_lea.sflag [#allocation4], %s634
        %s636 = sand.u32 %s183, 1
        %s637 = smul.addr %s636, 2
        %s638 = scalar_lea.vmem [#allocation3], %s637
        // Predicated region
        $region49: #{pinn_forward.1} parent=47 // pred_check
          %p639 = pneg %p193
        $region50: #{pinn_forward.1} parent=47 // pred_check_branch
          %641 = sbr.rel (%p639) target = $region52
        $region51: #{pinn_forward.1} parent=47 // pred_region
          %s642 = smul.u32 2, %s23
          %s644 = ssub.s32 32, 32
          %645 = vsyncadd %s635, %s644
          %s646 = smul.addr %s642, 16
          %s647 = scalar_lea.hbm %s7, %s646
          %s649 = sshll.u32 %s638, 4
          %s650 = int_to_ptr.vmem [resolvable:$true] %s649
          %652 = dma.vmem_to_hbm [thread:$0]  %s650, 32, %s647, %s635
        $region52: #{pinn_forward.1} parent=47 // pred_fallthru
          _
      $region48: #{pinn_forward.1} parent=5 // pred_fallthru
        _
      %p653 = scmp.le.s32.totalorder 2, %s18
      // Predicated region
      $region53: #{pinn_forward.1} parent=5 // pred_check
        %p654 = pneg %p653
      $region54: #{pinn_forward.1} parent=5 // pred_check_branch
        %656 = sbr.rel (%p654) target = $region56
      $region55: #{pinn_forward.1} parent=5 // pred_region
        %s657 = ssub.s32 %s18, 2
        // Predicated region
        $region57: #{pinn_forward.1} parent=55 // pred_check
          %p658 = pneg %p199
        $region58: #{pinn_forward.1} parent=55 // pred_check_branch
          %660 = sbr.rel (%p658) target = $region60
        $region59: #{pinn_forward.1} parent=55 // pred_region
          %s661 = sand.u32 %s184, 1
          %s662 = scalar_lea.sflag [#allocation4], %s661
          %s663 = sand.u32 %s184, 1
          %s664 = smul.addr %s663, 2
          %s665 = scalar_lea.vmem [#allocation3], %s664
          %666 = dma.done %s662, 32
        $region60: #{pinn_forward.1} parent=55 // pred_fallthru
          _
      $region56: #{pinn_forward.1} parent=5 // pred_fallthru
        _
    $region6: #{pinn_forward.1} parent=1 // loop_footer
      %s22 = sadd.s32 1, %s18
    $region7: #{pinn_forward.1} parent=1 // loop_footer_branch
      %17 = sbr.rel target = $region3
    $region8: #{pinn_forward.1} parent=1 // loop_exit
      _
    %667 = vsyncpa [#allocation4], 1
    %s668 = scalar_lea.sflag [#allocation4], 1
    %669 = vsyncpa %s668, 1

</llo_original>
